<compile_context>
chip_gen: v6e
topology: v6e:2x2x1
jax: 0.10.0
libtpu: 0.0.40
codegen_flags: <defaults>
</compile_context>

<pallas_src>
import numpy as np
import jax
import jax.numpy as jnp
from jax import lax
from jax.experimental import pallas as pl
from jax.experimental.pallas import tpu as pltpu

# Small synthetic MERL-like resolution (real MERL is 90 x 90 x 180, basis 240).
TH_RES, TD_RES, PD_RES = 8, 8, 16
N_FULL = TH_RES * TD_RES * PD_RES          # 1024 table rows
BASIS_NUM = 32
TM = 512                                   # recon tile (lane axis of recon)
LANE = 128                                 # gather block width (min lane tile)
EPS = 0.001


# ----------------------------- Pallas kernels --------------------------------

def _recon_kernel(ct_ref, qt_ref, scale_ref, bias_ref, out_ref):
    """One lane-dense recon tile: out = exp(c_aug^T @ Q_aug^T_tile)*scale + bias, (3, TM).

    The relative-offset + log(median+eps) term is folded into the last row of
    Q_aug / last (ones) column of c_aug, so the MXU emits mapped+off2 directly.
    """
    mapped = jnp.dot(ct_ref[...], qt_ref[...], preferred_element_type=jnp.float32)
    out_ref[0] = jnp.exp(mapped) * scale_ref[...] + bias_ref[...]


def masked_recon_pallas(cT_aug, Qt_aug, scale, bias):
    """Channel-major masked reconstruction, tiled as (n_tiles, 3, TM)."""
    n_aug, m_pad = Qt_aug.shape
    n_tiles = m_pad // TM
    return pl.pallas_call(
        _recon_kernel,
        out_shape=jax.ShapeDtypeStruct((n_tiles, 3, TM), jnp.float32),
        grid=(n_tiles,),
        in_specs=[
            pl.BlockSpec((3, n_aug), lambda i: (0, 0)),    # c_aug^T     (resident)
            pl.BlockSpec((n_aug, TM), lambda i: (0, i)),   # Q_aug^T tile(streamed)
            pl.BlockSpec((1, TM), lambda i: (0, i)),       # scale
            pl.BlockSpec((1, TM), lambda i: (0, i)),       # bias
        ],
        out_specs=pl.BlockSpec((1, 3, TM), lambda i: (i, 0, 0)),
        compiler_params=pltpu.CompilerParams(
            dimension_semantics=("parallel",),             # megacore-shardable
            vmem_limit_bytes=32 * 1024 * 1024,             # safe on v7x's 64 MiB VMEM
        ),
    )(cT_aug, Qt_aug, scale, bias)


def _gather_kernel(midx_ref, recon_ref, out_ref):
    """Select column (midx % LANE) of the prefetch-selected (3, LANE) block into out row b."""
    b = pl.program_id(0)
    off = midx_ref[b] % LANE
    blk = recon_ref[0]                                     # (3, LANE)
    lane = lax.broadcasted_iota(jnp.int32, blk.shape, 1)
    out_ref[b, :] = jnp.sum(jnp.where(lane == off, blk, 0.0), axis=1)


def merl_gather_pallas(midx, recon_tiled):
    """O(B) MERL table lookup: scalar-prefetch index-driven (3, 128) block gather."""
    b = midx.shape[0]
    n_tiles, _, tm = recon_tiled.shape
    assert tm % LANE == 0
    return pl.pallas_call(
        _gather_kernel,
        out_shape=jax.ShapeDtypeStruct((b, 3), jnp.float32),
        grid_spec=pltpu.PrefetchScalarGridSpec(
            num_scalar_prefetch=1,
            grid=(b,),
            in_specs=[pl.BlockSpec(
                (1, 3, LANE),
                lambda i, midx_ref: (midx_ref[i] // tm, 0,
                                     (midx_ref[i] % tm) // LANE))],
            out_specs=pl.BlockSpec((b, 3), lambda i, midx_ref: (0, 0)),
        ),
        compiler_params=pltpu.CompilerParams(dimension_semantics=("arbitrary",)),
    )(midx.astype(jnp.int32), recon_tiled)


# ------------------------------ PCARR module ---------------------------------

class PCARRPallas:
    """JAX/Pallas port of PCARR.forward (Ridge-Regression PCA BRDF model)."""

    def __init__(self, key, basis_num=BASIS_NUM, q_dtype=jnp.float32):
        # q_dtype=jnp.bfloat16 halves Q's HBM traffic on v6e/v7x (accumulation stays f32).
        self.n = basis_num
        ks = jax.random.split(key, 5)
        # Deterministic synthetic stand-ins for the precomputed .npy buffers,
        # already in the post-__init__ (reshaped + masked) layout.
        mask = np.asarray(jax.random.bernoulli(ks[0], 0.85, (N_FULL,)))
        self.mask_idx = np.nonzero(mask)[0]                       # static indices
        self.m = int(self.mask_idx.shape[0])
        self.Q = jax.random.normal(ks[1], (self.m, basis_num), jnp.float32) * 0.05
        self.median = jax.random.uniform(ks[2], (self.m, 1), jnp.float32, 0.01, 1.0)
        self.relativeOffset = jax.random.normal(ks[3], (self.m, 1), jnp.float32) * 0.1
        self.cosMap = jax.random.uniform(ks[4], (self.m, 1), jnp.float32, 0.05, 1.0)

        # Folded epilogue constants:
        #   unmap(x) = (exp(x)*(median+eps)-eps)/cosMap
        #            = exp(x + log(median+eps)) * (1/cosMap) + (-eps/cosMap)
        off2 = self.relativeOffset + jnp.log(self.median + EPS)   # (m, 1)
        scale = 1.0 / self.cosMap                                 # (m, 1)
        bias = -EPS / self.cosMap                                 # (m, 1)

        # Pad masked rows to a multiple of TM, guaranteeing >= 1 pad row.  Pad
        # rows have Q=0, off2=0, scale=0, bias=0 -> exp(0)*0+0 = 0, so they are
        # inert and double as the "unmasked bin" zero row for the gather.
        m_pad = ((self.m + 1 + TM - 1) // TM) * TM
        pad = m_pad - self.m
        self.m_pad = m_pad
        # Channel-major (lane-dense) operands: table rows on lanes.  The off2
        # row is appended to Q^T so the MXU computes mapped + off2 directly
        # (c gets a matching ones column at forward time).
        Qt_p = jnp.pad(self.Q.T, ((0, 0), (0, pad)))                        # (n, m_pad)
        off2_p = jnp.pad(off2.T, ((0, 0), (0, pad)))                        # (1, m_pad)
        self.Qt_aug = jnp.concatenate([Qt_p, off2_p], axis=0).astype(q_dtype)  # (n+1, m_pad)
        self.scale_p = jnp.pad(scale.T, ((0, 0), (0, pad)))                 # (1, m_pad)
        self.bias_p = jnp.pad(bias.T, ((0, 0), (0, pad)))                   # (1, m_pad)
        self.q_dtype = q_dtype

        # Static inverse map: full table bin -> padded masked row; unmasked
        # bins -> pad row self.m (always zero).  Replaces unmask-scatter + re-gather.
        inv = np.full((N_FULL,), self.m, dtype=np.int32)
        inv[self.mask_idx] = np.arange(self.m, dtype=np.int32)
        self.inv_map = jnp.asarray(inv)

    def _recon_tiled(self, c):
        cT = c.T.astype(self.q_dtype)                             # (3, n)
        ones = jnp.ones((3, 1), self.q_dtype)
        cT_aug = jnp.concatenate([cT, ones], axis=1)              # (3, n+1)
        return masked_recon_pallas(cT_aug, self.Qt_aug, self.scale_p, self.bias_p)

    def getBRDFTensor(self, c):
        """Full (N_FULL, 3) table (API parity); forward() bypasses this scatter."""
        recon_t = self._recon_tiled(c)                            # (n_tiles, 3, TM)
        masked = recon_t.transpose(0, 2, 1).reshape(self.m_pad, 3)[: self.m]
        return jnp.zeros((N_FULL, 3), jnp.float32).at[self.mask_idx].set(masked)

    @staticmethod
    def _flat_bins(rangles):
        """Standard MERL binning (Merl.merl_lookup with scaling=False)."""
        # TODO(synk): the `higher=True` interpolation variant of Merl.merl_lookup is
        # not in the provided source (Merl class missing); nearest-bin indexing used.
        theta_h, theta_d, phi_d = rangles[:, 0], rangles[:, 1], rangles[:, 2]
        th_idx = jnp.clip(
            jnp.floor(jnp.sqrt(jnp.clip(theta_h, 0.0, None) / (jnp.pi / 2)) * TH_RES),
            0, TH_RES - 1).astype(jnp.int32)
        td_idx = jnp.clip(jnp.floor(theta_d / (jnp.pi / 2) * TD_RES),
                          0, TD_RES - 1).astype(jnp.int32)
        pd = jnp.where(phi_d < 0, phi_d + jnp.pi, phi_d)
        pd_idx = jnp.clip(jnp.floor(pd / jnp.pi * PD_RES),
                          0, PD_RES - 1).astype(jnp.int32)
        return th_idx * (TD_RES * PD_RES) + td_idx * PD_RES + pd_idx

    def forward(self, c, rangles):
        recon_t = self._recon_tiled(c)                            # (n_tiles, 3, TM)
        flat = self._flat_bins(rangles)                           # (B,) full-table bins
        midx = jnp.take(self.inv_map, flat)                       # (B,) padded masked rows
        # == Merl.merl_lookup(recon.T, th, td, pd).T  -> (B, 3)
        return merl_gather_pallas(midx, recon_t)


# ---------------------------------- main --------------------------------------

def _reference_forward(model, c, rangles):
    """Pure-JAX reference with the original (unfused, scatter-based) math."""
    mapped = model.Q @ c + model.relativeOffset
    masked = (jnp.exp(mapped) * (model.median + EPS) - EPS) / model.cosMap
    recon = jnp.zeros((N_FULL, 3), jnp.float32).at[model.mask_idx].set(masked)
    return recon[PCARRPallas._flat_bins(rangles)]


if __name__ == "__main__":
    key = jax.random.PRNGKey(0)
    k_model, k_c, k_ang = jax.random.split(key, 3)
    model = PCARRPallas(k_model)

    c = jax.random.normal(k_c, (BASIS_NUM, 3), jnp.float32) * 0.1   # RR coefficients
    B = 8
    ka, kb, kc2 = jax.random.split(k_ang, 3)
    theta_h = jax.random.uniform(ka, (B,), jnp.float32, 0.0, jnp.pi / 2)
    theta_d = jax.random.uniform(kb, (B,), jnp.float32, 0.0, jnp.pi / 2)
    phi_d = jax.random.uniform(kc2, (B,), jnp.float32, 0.0, jnp.pi)
    rangles = jnp.stack([theta_h, theta_d, phi_d], axis=1)          # (B, 3)

    out = jax.block_until_ready(model.forward(c, rangles))
    assert out.shape == (B, 3) and out.dtype == jnp.float32
    assert bool(jnp.all(jnp.isfinite(out)))

    ref = _reference_forward(model, c, rangles)
    assert bool(jnp.allclose(out, ref, rtol=5e-3, atol=1e-4)), (
        "mismatch vs JAX reference: max abs err "
        f"{float(jnp.max(jnp.abs(out - ref)))}")
    print("KERNEL_OK")
</pallas_src>

<mosaic_0001>
module attributes {stable_mosaic.version = 11 : i64} {
  func.func @_recon_kernel(%arg0: i32, %arg1: memref<3x33xf32, #tpu.memory_space<vmem>>, %arg2: memref<33x512xf32, #tpu.memory_space<vmem>>, %arg3: memref<1x512xf32, #tpu.memory_space<vmem>>, %arg4: memref<1x512xf32, #tpu.memory_space<vmem>>, %arg5: memref<1x3x512xf32, #tpu.memory_space<vmem>>) attributes {dimension_semantics = [#tpu.dimension_semantics<parallel>], iteration_bounds = array<i64: 2>, scalar_prefetch = 0 : i64, scratch_operands = 0 : i64, tpu.core_type = #tpu.core_type<tc>, window_params = [{pipeline_mode = #tpu.pipeline_mode<synchronous>, transform_indices = @transform_0, window_bounds = array<i64: 3, 33>}, {transform_indices = @transform_1, window_bounds = array<i64: 33, 512>}, {transform_indices = @transform_2, window_bounds = array<i64: 1, 512>}, {transform_indices = @transform_3, window_bounds = array<i64: 1, 512>}, {transform_indices = @transform_4, window_bounds = array<i64: 1, 3, 512>}]} {
    %c0 = arith.constant 0 : index
    %c0_0 = arith.constant 0 : index
    %0 = vector.load %arg1[%c0, %c0_0] : memref<3x33xf32, #tpu.memory_space<vmem>>, vector<3x33xf32>
    %c0_1 = arith.constant 0 : index
    %c0_2 = arith.constant 0 : index
    %1 = vector.load %arg2[%c0_1, %c0_2] : memref<33x512xf32, #tpu.memory_space<vmem>>, vector<33x512xf32>
    %cst = arith.constant dense<0.000000e+00> : vector<3x512xf32>
    %2 = tpu.matmul %0, %1, %cst {dimension_numbers = #tpu.dot_dimension_numbers<[1], [0], [0], [1], [0, 0, 1, 1], [], []>} : vector<3x33xf32>, vector<33x512xf32>, vector<3x512xf32> -> vector<3x512xf32>
    %3 = math.exp %2 : vector<3x512xf32>
    %c0_3 = arith.constant 0 : index
    %c0_4 = arith.constant 0 : index
    %4 = vector.load %arg3[%c0_3, %c0_4] : memref<1x512xf32, #tpu.memory_space<vmem>>, vector<1x512xf32>
    %5 = vector.broadcast %4 : vector<1x512xf32> to vector<3x512xf32>
    %6 = arith.mulf %3, %5 : vector<3x512xf32>
    %c0_5 = arith.constant 0 : index
    %c0_6 = arith.constant 0 : index
    %7 = vector.load %arg4[%c0_5, %c0_6] : memref<1x512xf32, #tpu.memory_space<vmem>>, vector<1x512xf32>
    %8 = vector.broadcast %7 : vector<1x512xf32> to vector<3x512xf32>
    %9 = arith.addf %6, %8 : vector<3x512xf32>
    %c0_7 = arith.constant 0 : index
    %c0_8 = arith.constant 0 : index
    %c0_9 = arith.constant 0 : index
    %10 = vector.load %arg5[%c0_7, %c0_8, %c0_9] : memref<1x3x512xf32, #tpu.memory_space<vmem>>, vector<1x3x512xf32>
    %11 = vector.shape_cast %10 : vector<1x3x512xf32> to vector<3x512xf32>
    %12 = vector.shape_cast %9 : vector<3x512xf32> to vector<1x3x512xf32>
    tpu.vector_store %arg5[%c0_7, %c0_8, %c0_9], %12 {strides = array<i32>} : memref<1x3x512xf32, #tpu.memory_space<vmem>>, vector<1x3x512xf32>,
    return
  }
  func.func @transform_0(%arg0: i32) -> (i32, i32) {
    %c0_i32 = arith.constant 0 : i32
    %c0_i32_0 = arith.constant 0 : i32
    %c0_i32_1 = arith.constant 0 : i32
    return %c0_i32, %c0_i32_0 : i32, i32
  }
  func.func @transform_1(%arg0: i32) -> (i32, i32) {
    %c0_i32 = arith.constant 0 : i32
    %c0_i32_0 = arith.constant 0 : i32
    return %c0_i32, %arg0 : i32, i32
  }
  func.func @transform_2(%arg0: i32) -> (i32, i32) {
    %c0_i32 = arith.constant 0 : i32
    %c0_i32_0 = arith.constant 0 : i32
    return %c0_i32, %arg0 : i32, i32
  }
  func.func @transform_3(%arg0: i32) -> (i32, i32) {
    %c0_i32 = arith.constant 0 : i32
    %c0_i32_0 = arith.constant 0 : i32
    return %c0_i32, %arg0 : i32, i32
  }
  func.func @transform_4(%arg0: i32) -> (i32, i32, i32) {
    %c0_i32 = arith.constant 0 : i32
    %c0_i32_0 = arith.constant 0 : i32
    %c0_i32_1 = arith.constant 0 : i32
    return %arg0, %c0_i32, %c0_i32_0 : i32, i32, i32
  }
}

</mosaic_0001>

<llo_original>
// kernel: tpu_custom_call.1
$region0: #{tpu_custom_call.1}
  #allocation0 [shape = 'u32[]', space=smem, size = 0x4, offset = 0x4, fixed_abs, tag = 'smem constant byte address 0x4 - core index']
  #allocation1 [shape = 'u32[144,128]{1,0:T(1,128)}', space=vmem, size = 0x12000, scoped, tag = 'internal scratch']
  %s0 = inlined_call_operand.hbm [shape: f32[3,33], index: 0, kind: input, shape index: {}]
  %s1 = inlined_call_operand.hbm [shape: f32[33,1024], index: 1, kind: input, shape index: {}]
  %s2 = inlined_call_operand.hbm [shape: f32[1,1024], index: 2, kind: input, shape index: {}]
  %s3 = inlined_call_operand.hbm [shape: f32[1,1024], index: 3, kind: input, shape index: {}]
  %s4 = inlined_call_operand.vmem [shape: f32[2,3,512], index: 4, kind: output, shape index: {}]
  %s5 = sld [smem:[#allocation0]]
  $region65: #{tpu_custom_call.1} parent=0
    _
  %s7 = ssub.s32 1, %s5
  %s8 = scalar_select 0, %s7, %s5
  $region1: #{tpu_custom_call.1} parent=0
    #allocation2 [shape = 'u8[2048]{0}', space=vmem, size = 0x800, scoped, tag = 'input window, operand 0, single buffered']
    #allocation3 [shape = 's32[2]{0}', space=sflag, size = 0x8, scoped, tag = 'scoped memory for tpu_custom_call.1']
    #allocation4 [shape = 'u8[163840]{0}', space=vmem, size = 0x28000, scoped, tag = 'input window, operand 1']
    #allocation5 [shape = 's32[2]{0}', space=sflag, size = 0x8, scoped, tag = 'scoped memory for tpu_custom_call.1']
    #allocation6 [shape = 'u8[4096]{0}', space=vmem, size = 0x1000, scoped, tag = 'input window, operand 2']
    #allocation7 [shape = 'u8[4096]{0}', space=vmem, size = 0x1000, scoped, tag = 'input window, operand 3']
    #allocation8 [shape = 's32[2]{0}', space=sflag, size = 0x8, scoped, tag = 'scoped memory for tpu_custom_call.1']
    %9 = vsyncpa [#allocation3], 0
    %10 = vsyncpa [#allocation5], 0
    %s11 = scalar_lea.sflag [#allocation5], 1
    %12 = vsyncpa %s11, 0
    %13 = vsyncpa [#allocation8], 0
    %s14 = scalar_lea.sflag [#allocation8], 1
    %15 = vsyncpa %s14, 0
    loop: start=0, step=1, limit=4
    $region2: #{tpu_custom_call.1} parent=1 // loop_pre_header
      _
    $region3: #{tpu_custom_call.1} parent=1 // loop_header
      %s17 = sphi 0, %s21
      %p18 = scmp.ge.s32.totalorder %s17, 4
      %s25 = sphi 0, %s25
      %s27 = sphi 0, %s25
      %s28 = sphi 0, %s27
      %s42 = sphi 0, %s28
      %s48 = sphi 0, %s50
      %s51 = sphi 0, %s48
      %s52 = sphi 0, %s51
      %s68 = sphi 0, %s52
      %s74 = sphi 0, %s76
      %s77 = sphi 0, %s74
      %s78 = sphi 0, %s77
      %s94 = sphi 0, %s78
      %s100 = sphi 0, %s102
      %s103 = sphi 0, %s100
      %s104 = sphi 0, %s103
      %s120 = sphi 0, %s104
      %s126 = sphi 0, %s128
      %s129 = sphi 0, %s126
      %s130 = sphi 0, %s129
      %s146 = sphi 0, %s130
    $region4: #{tpu_custom_call.1} parent=1 // loop_header_branch
      %20 = sbr.rel (%p18) target = $region8
    $region5: #{tpu_custom_call.1} parent=1 // loop_body
      %s22 = ssub.s32 %s17, 1
      %s23 = ssub.s32 %s17, 2
      %s24 = sadd.s32 %s17, 1
      %s26 = sadd.s32 %s25, 1
      %p29 = scmp.eq.s32.totalorder %s17, 1
      %p30 = scmp.ne.s32.totalorder %s25, %s27
      %p31 = scmp.eq.s32.totalorder %s17, 0
      %p32 = por %p30, %p31
      %p33 = scmp.ne.s32.totalorder %s25, %s27
      %p34 = scmp.eq.s32.totalorder %s22, 1
      %p35 = por %p33, %p34
      %p36 = scmp.ne.s32.totalorder %s27, %s28
      %p37 = scmp.eq.s32.totalorder %s22, 0
      %p38 = por %p36, %p37
      %p39 = scmp.ne.s32.totalorder %s27, %s28
      %p40 = scmp.eq.s32.totalorder %s23, 1
      %p41 = por %p39, %p40
      %p43 = scmp.ne.s32.totalorder %s28, %s42
      %p44 = scmp.eq.s32.totalorder %s23, 0
      %p45 = por %p43, %p44
      %s46 = ssub.s32 %s17, %s24
      %p47 = scmp.eq.s32.totalorder %s46, 0
      %s49 = sadd.s32 %s48, 1
      %s50 = scalar_select %p47, %s48, %s49
      %p53 = pneg %p47
      %p54 = scmp.eq.s32.totalorder %s17, 1
      %p55 = por %p53, %p54
      %p56 = scmp.ne.s32.totalorder %s48, %s51
      %p57 = scmp.eq.s32.totalorder %s17, 0
      %p58 = por %p56, %p57
      %p59 = scmp.ne.s32.totalorder %s48, %s51
      %p60 = scmp.eq.s32.totalorder %s22, 1
      %p61 = por %p59, %p60
      %p62 = scmp.ne.s32.totalorder %s51, %s52
      %p63 = scmp.eq.s32.totalorder %s22, 0
      %p64 = por %p62, %p63
      %p65 = scmp.ne.s32.totalorder %s51, %s52
      %p66 = scmp.eq.s32.totalorder %s23, 1
      %p67 = por %p65, %p66
      %p69 = scmp.ne.s32.totalorder %s52, %s68
      %p70 = scmp.eq.s32.totalorder %s23, 0
      %p71 = por %p69, %p70
      %s72 = ssub.s32 %s17, %s24
      %p73 = scmp.eq.s32.totalorder %s72, 0
      %s75 = sadd.s32 %s74, 1
      %s76 = scalar_select %p73, %s74, %s75
      %p79 = pneg %p73
      %p80 = scmp.eq.s32.totalorder %s17, 1
      %p81 = por %p79, %p80
      %p82 = scmp.ne.s32.totalorder %s74, %s77
      %p83 = scmp.eq.s32.totalorder %s17, 0
      %p84 = por %p82, %p83
      %p85 = scmp.ne.s32.totalorder %s74, %s77
      %p86 = scmp.eq.s32.totalorder %s22, 1
      %p87 = por %p85, %p86
      %p88 = scmp.ne.s32.totalorder %s77, %s78
      %p89 = scmp.eq.s32.totalorder %s22, 0
      %p90 = por %p88, %p89
      %p91 = scmp.ne.s32.totalorder %s77, %s78
      %p92 = scmp.eq.s32.totalorder %s23, 1
      %p93 = por %p91, %p92
      %p95 = scmp.ne.s32.totalorder %s78, %s94
      %p96 = scmp.eq.s32.totalorder %s23, 0
      %p97 = por %p95, %p96
      %s98 = ssub.s32 %s17, %s24
      %p99 = scmp.eq.s32.totalorder %s98, 0
      %s101 = sadd.s32 %s100, 1
      %s102 = scalar_select %p99, %s100, %s101
      %p105 = pneg %p99
      %p106 = scmp.eq.s32.totalorder %s17, 1
      %p107 = por %p105, %p106
      %p108 = scmp.ne.s32.totalorder %s100, %s103
      %p109 = scmp.eq.s32.totalorder %s17, 0
      %p110 = por %p108, %p109
      %p111 = scmp.ne.s32.totalorder %s100, %s103
      %p112 = scmp.eq.s32.totalorder %s22, 1
      %p113 = por %p111, %p112
      %p114 = scmp.ne.s32.totalorder %s103, %s104
      %p115 = scmp.eq.s32.totalorder %s22, 0
      %p116 = por %p114, %p115
      %p117 = scmp.ne.s32.totalorder %s103, %s104
      %p118 = scmp.eq.s32.totalorder %s23, 1
      %p119 = por %p117, %p118
      %p121 = scmp.ne.s32.totalorder %s104, %s120
      %p122 = scmp.eq.s32.totalorder %s23, 0
      %p123 = por %p121, %p122
      %s124 = ssub.s32 %s17, %s24
      %p125 = scmp.eq.s32.totalorder %s124, 0
      %s127 = sadd.s32 %s126, 1
      %s128 = scalar_select %p125, %s126, %s127
      %p131 = pneg %p125
      %p132 = scmp.eq.s32.totalorder %s17, 1
      %p133 = por %p131, %p132
      %p134 = scmp.ne.s32.totalorder %s126, %s129
      %p135 = scmp.eq.s32.totalorder %s17, 0
      %p136 = por %p134, %p135
      %p137 = scmp.ne.s32.totalorder %s126, %s129
      %p138 = scmp.eq.s32.totalorder %s22, 1
      %p139 = por %p137, %p138
      %p140 = scmp.ne.s32.totalorder %s129, %s130
      %p141 = scmp.eq.s32.totalorder %s22, 0
      %p142 = por %p140, %p141
      %p143 = scmp.ne.s32.totalorder %s129, %s130
      %p144 = scmp.eq.s32.totalorder %s23, 1
      %p145 = por %p143, %p144
      %p147 = scmp.ne.s32.totalorder %s130, %s146
      %p148 = scmp.eq.s32.totalorder %s23, 0
      %p149 = por %p147, %p148
      %p150 = scmp.le.s32.totalorder 1, %s17
      %p151 = scmp.lt.s32.totalorder %s17, 3
      %p152 = pnand %p150, %p151
      %p153 = pneg %p152
      // Predicated region
      $region9: #{tpu_custom_call.1} parent=5 // pred_check
        _
      $region10: #{tpu_custom_call.1} parent=5 // pred_check_branch
        %155 = sbr.rel (%p152) target = $region12
      $region11: #{tpu_custom_call.1} parent=5 // pred_region
        %s156 = ssub.s32 %s17, 1
        // Predicated region
        $region13: #{tpu_custom_call.1} parent=11 // pred_check
          %p157 = pneg %p38
        $region14: #{tpu_custom_call.1} parent=11 // pred_check_branch
          %159 = sbr.rel (%p157) target = $region16
        $region15: #{tpu_custom_call.1} parent=11 // pred_region
          %s161 = ssub.s32 64, 64
          %162 = vsyncadd [#allocation3], %s161
          %s164 = sshll.u32 [#allocation2], 4
          %s165 = int_to_ptr.vmem [resolvable:$true] %s164
          %167 = dma.hbm_to_vmem [thread:$0]  %s0, 64, %s165, [#allocation3]
        $region16: #{tpu_custom_call.1} parent=11 // pred_fallthru
          _
      $region12: #{tpu_custom_call.1} parent=5 // pred_fallthru
        _
      %p168 = scmp.lt.s32.totalorder %s17, 2
      // Predicated region
      $region17: #{tpu_custom_call.1} parent=5 // pred_check
        %p169 = pneg %p168
      $region18: #{tpu_custom_call.1} parent=5 // pred_check_branch
        %171 = sbr.rel (%p169) target = $region20
      $region19: #{tpu_custom_call.1} parent=5 // pred_region
        // Predicated region
        $region21: #{tpu_custom_call.1} parent=19 // pred_check
          %p172 = pneg %p58
        $region22: #{tpu_custom_call.1} parent=19 // pred_check_branch
          %174 = sbr.rel (%p172) target = $region24
        $region23: #{tpu_custom_call.1} parent=19 // pred_region
          %s175 = sand.u32 %s17, 1
          %s176 = scalar_lea.sflag [#allocation5], %s175
          %s177 = sand.u32 %s48, 1
          %s178 = smul.addr %s177, 160
          %s179 = scalar_lea.vmem [#allocation4], %s178
          %s180 = smul.u32 4, %s17
          %s182 = ssub.s32 2560, 2560
          %183 = vsyncadd %s176, %s182
          %s184 = smul.addr %s180, 128
          %s185 = scalar_lea.hbm %s1, %s184
          %s186 = sshll.u32 %s179, 4
          %s187 = int_to_ptr.vmem [resolvable:$true] %s186
          %192 = dma.hbm_to_vmem [thread:$0]  %s185, 2560, %s187, %s176, 1024, 512, 32
        $region24: #{tpu_custom_call.1} parent=19 // pred_fallthru
          _
        // Predicated region
        $region25: #{tpu_custom_call.1} parent=19 // pred_check
          %p193 = pneg %p84
        $region26: #{tpu_custom_call.1} parent=19 // pred_check_branch
          %195 = sbr.rel (%p193) target = $region28
        $region27: #{tpu_custom_call.1} parent=19 // pred_region
          %s196 = sand.u32 %s17, 1
          %s197 = scalar_lea.sflag [#allocation5], %s196
          %s198 = sand.u32 %s74, 1
          %s199 = smul.addr %s198, 4
          %s200 = scalar_lea.vmem [#allocation6], %s199
          %s201 = smul.u32 4, %s17
          %s203 = ssub.s32 64, 64
          %204 = vsyncadd %s197, %s203
          %s205 = smul.addr %s201, 16
          %s206 = scalar_lea.hbm %s2, %s205
          %s208 = sshll.u32 %s200, 4
          %s209 = int_to_ptr.vmem [resolvable:$true] %s208
          %211 = dma.hbm_to_vmem [thread:$0]  %s206, 64, %s209, %s197
        $region28: #{tpu_custom_call.1} parent=19 // pred_fallthru
          _
        // Predicated region
        $region29: #{tpu_custom_call.1} parent=19 // pred_check
          %p212 = pneg %p110
        $region30: #{tpu_custom_call.1} parent=19 // pred_check_branch
          %214 = sbr.rel (%p212) target = $region32
        $region31: #{tpu_custom_call.1} parent=19 // pred_region
          %s215 = sand.u32 %s100, 1
          %s216 = scalar_lea.sflag [#allocation8], %s215
          %s217 = sand.u32 %s100, 1
          %s218 = smul.addr %s217, 4
          %s219 = scalar_lea.vmem [#allocation7], %s218
          %s220 = smul.u32 4, %s17
          %s222 = ssub.s32 64, 64
          %223 = vsyncadd %s216, %s222
          %s224 = smul.addr %s220, 16
          %s225 = scalar_lea.hbm %s3, %s224
          %s227 = sshll.u32 %s219, 4
          %s228 = int_to_ptr.vmem [resolvable:$true] %s227
          %230 = dma.hbm_to_vmem [thread:$0]  %s225, 64, %s228, %s216
        $region32: #{tpu_custom_call.1} parent=19 // pred_fallthru
          _
      $region20: #{tpu_custom_call.1} parent=5 // pred_fallthru
        _
      %p231 = scmp.le.s32.totalorder 1, %s17
      %p232 = scmp.lt.s32.totalorder %s17, 3
      %p233 = pnand %p231, %p232
      %p234 = pneg %p233
      // Predicated region
      $region33: #{tpu_custom_call.1} parent=5 // pred_check
        _
      $region34: #{tpu_custom_call.1} parent=5 // pred_check_branch
        %236 = sbr.rel (%p233) target = $region36
      $region35: #{tpu_custom_call.1} parent=5 // pred_region
        %s237 = ssub.s32 %s17, 1
        // Predicated region
        $region37: #{tpu_custom_call.1} parent=35 // pred_check
          %p238 = pneg %p38
        $region38: #{tpu_custom_call.1} parent=35 // pred_check_branch
          %240 = sbr.rel (%p238) target = $region40
        $region39: #{tpu_custom_call.1} parent=35 // pred_region
          %241 = dma.done [#allocation3], 64
        $region40: #{tpu_custom_call.1} parent=35 // pred_fallthru
          _
        %s242 = sand.u32 %s22, 1
        %s243 = scalar_lea.sflag [#allocation5], %s242
        %s244 = sand.u32 %s51, 1
        %s245 = smul.addr %s244, 160
        %s246 = scalar_lea.vmem [#allocation4], %s245
        // Predicated region
        $region41: #{tpu_custom_call.1} parent=35 // pred_check
          %p247 = pneg %p64
        $region42: #{tpu_custom_call.1} parent=35 // pred_check_branch
          %249 = sbr.rel (%p247) target = $region44
        $region43: #{tpu_custom_call.1} parent=35 // pred_region
          %250 = dma.done %s243, 2560
        $region44: #{tpu_custom_call.1} parent=35 // pred_fallthru
          _
        %s251 = sand.u32 %s22, 1
        %s252 = scalar_lea.sflag [#allocation5], %s251
        %s253 = sand.u32 %s77, 1
        %s254 = smul.addr %s253, 4
        %s255 = scalar_lea.vmem [#allocation6], %s254
        // Predicated region
        $region45: #{tpu_custom_call.1} parent=35 // pred_check
          %p256 = pneg %p90
        $region46: #{tpu_custom_call.1} parent=35 // pred_check_branch
          %258 = sbr.rel (%p256) target = $region48
        $region47: #{tpu_custom_call.1} parent=35 // pred_region
          %259 = dma.done %s252, 64
        $region48: #{tpu_custom_call.1} parent=35 // pred_fallthru
          _
        %s260 = sand.u32 %s103, 1
        %s261 = scalar_lea.sflag [#allocation8], %s260
        %s262 = sand.u32 %s103, 1
        %s263 = smul.addr %s262, 4
        %s264 = scalar_lea.vmem [#allocation7], %s263
        // Predicated region
        $region49: #{tpu_custom_call.1} parent=35 // pred_check
          %p265 = pneg %p116
        $region50: #{tpu_custom_call.1} parent=35 // pred_check_branch
          %267 = sbr.rel (%p265) target = $region52
        $region51: #{tpu_custom_call.1} parent=35 // pred_region
          %268 = dma.done %s261, 64
        $region52: #{tpu_custom_call.1} parent=35 // pred_fallthru
          _
        %p269 = pneg %p38
        %p270 = pneg %p35
        %s271 = sand.u32 %s22, 1
        %s272 = scalar_lea.sflag [#allocation5], %s271
        %s273 = sand.u32 %s51, 1
        %s274 = smul.addr %s273, 160
        %s275 = scalar_lea.vmem [#allocation4], %s274
        %p276 = pneg %p64
        %p277 = pneg %p61
        %s278 = sand.u32 %s22, 1
        %s279 = scalar_lea.sflag [#allocation5], %s278
        %s280 = sand.u32 %s77, 1
        %s281 = smul.addr %s280, 4
        %s282 = scalar_lea.vmem [#allocation6], %s281
        %p283 = pneg %p90
        %p284 = pneg %p87
        %s285 = sand.u32 %s103, 1
        %s286 = scalar_lea.sflag [#allocation8], %s285
        %s287 = sand.u32 %s103, 1
        %s288 = smul.addr %s287, 4
        %s289 = scalar_lea.vmem [#allocation7], %s288
        %p290 = pneg %p116
        %p291 = pneg %p113
        %p292 = pneg %p142
        %p293 = pneg %p139
        %p294 = scmp.lt.s32.totalorder %s22, 1
        %s295 = scalar_select %p294, %s22, 1
        %s296 = smul.addr %s295, 4
        %s297 = smul.addr %s296, 4
        %s298 = scalar_lea.vmem %s4, %s297
        %s299 = smul.u32 4, %s22
        %s300 = smul.u32 4, %s22
        %s301 = smul.u32 4, %s22
        %p302 = scmp.lt.s32.totalorder %s22, 1
        %s303 = scalar_select %p302, %s22, 1
        %s304 = smul.addr %s303, 4
        %s305 = smul.addr %s304, 4
        %s306 = scalar_lea.vmem %s4, %s305
        %v307 = vld [vmem:[#allocation2] sm:$0x7]
        %v308 = vld [vmem:[%s246] sm:$0xff]
        %v309 = vld [vmem:[%s246 + $0x8] sm:$0xff]
        %v310 = vld [vmem:[%s246 + $0x10] sm:$0xff]
        %v311 = vld [vmem:[%s246 + $0x18] sm:$0xff]
        %v312 = vld [vmem:[%s246 + $0x20] sm:$0xff]
        %v313 = vld [vmem:[%s246 + $0x28] sm:$0xff]
        %v314 = vld [vmem:[%s246 + $0x30] sm:$0xff]
        %v315 = vld [vmem:[%s246 + $0x38] sm:$0xff]
        %v316 = vld [vmem:[%s246 + $0x40] sm:$0xff]
        %v317 = vld [vmem:[%s246 + $0x48] sm:$0xff]
        %v318 = vld [vmem:[%s246 + $0x50] sm:$0xff]
        %v319 = vld [vmem:[%s246 + $0x58] sm:$0xff]
        %v320 = vld [vmem:[%s246 + $0x60] sm:$0xff]
        %v321 = vld [vmem:[%s246 + $0x68] sm:$0xff]
        %v322 = vld [vmem:[%s246 + $0x70] sm:$0xff]
        %v323 = vld [vmem:[%s246 + $0x78] sm:$0xff]
        %v324 = vld [vmem:[%s246 + $0x80] sm:$0x1]
        %v325 = vld [vmem:[%s246 + $0x88] sm:$0x1]
        %v326 = vld [vmem:[%s246 + $0x90] sm:$0x1]
        %v327 = vld [vmem:[%s246 + $0x98] sm:$0x1]
        %vm328 = vcmask 269312
        %v330 = vsel %vm328, %v307, 0
        %vm332 = vcmask 1040384
        %v334 = vsel %vm332, %v324, 0
        %v337 = vsel %vm332, %v325, 0
        %v340 = vsel %vm332, %v326, 0
        %v343 = vsel %vm332, %v327, 0
        %345 = vmatprep.subr.mxu0 0.0
        %346 = vmatpush1.msra.mxu0 0.0
        %347 = vmatprep.subr.mxu0 0.0
        %348 = vmatpush1.msra.mxu0 0.0
        %349 = vmatprep.subr.mxu0 0.0
        %350 = vmatpush1.msra.mxu0 0.0
        %351 = vmatprep.subr.mxu0 0.0
        %352 = vmatpush1.msra.mxu0 0.0
        %353 = vmatprep.subr.mxu0 0.0
        %354 = vmatpush1.msra.mxu0 0.0
        %355 = vmatprep.subr.mxu0 0.0
        %356 = vmatpush1.msra.mxu0 0.0
        %357 = vmatprep.subr.mxu0 0.0
        %358 = vmatpush1.msra.mxu0 0.0
        %359 = vmatprep.subr.mxu0 0.0
        %360 = vmatpush1.msra.mxu0 0.0
        %361 = vmatprep.subr.mxu0 0.0
        %362 = vmatpush1.msra.mxu0 0.0
        %363 = vmatprep.subr.mxu0 0.0
        %364 = vmatpush1.msra.mxu0 0.0
        %365 = vmatprep.subr.mxu0 0.0
        %366 = vmatpush1.msra.mxu0 0.0
        %367 = vmatprep.subr.mxu0 %v337
        %368 = vmatpush1.msra.mxu0 %v334
        %369 = vmatprep.subr.mxu0 %v321
        %370 = vmatpush1.msra.mxu0 %v320
        %371 = vmatprep.subr.mxu0 %v317
        %372 = vmatpush1.msra.mxu0 %v316
        %373 = vmatprep.subr.mxu0 %v313
        %374 = vmatpush1.msra.mxu0 %v312
        %375 = vmatprep.subr.mxu0 %v309
        %376 = vmatpush1.msra.mxu0 %v308
        %377 = vmatprep.subr.mxu0 0.0
        %378 = vmatpush2.msra.mxu0 0.0
        %379 = vmatprep.subr.mxu0 0.0
        %380 = vmatpush2.msra.mxu0 0.0
        %381 = vmatprep.subr.mxu0 0.0
        %382 = vmatpush2.msra.mxu0 0.0
        %383 = vmatprep.subr.mxu0 0.0
        %384 = vmatpush2.msra.mxu0 0.0
        %385 = vmatprep.subr.mxu0 0.0
        %386 = vmatpush2.msra.mxu0 0.0
        %387 = vmatprep.subr.mxu0 0.0
        %388 = vmatpush2.msra.mxu0 0.0
        %389 = vmatprep.subr.mxu0 0.0
        %390 = vmatpush2.msra.mxu0 0.0
        %391 = vmatprep.subr.mxu0 0.0
        %392 = vmatpush2.msra.mxu0 0.0
        %393 = vmatprep.subr.mxu0 0.0
        %394 = vmatpush2.msra.mxu0 0.0
        %395 = vmatprep.subr.mxu0 0.0
        %396 = vmatpush2.msra.mxu0 0.0
        %397 = vmatprep.subr.mxu0 0.0
        %398 = vmatpush2.msra.mxu0 0.0
        %399 = vmatprep.subr.mxu0 0.0
        %400 = vmatpush2.msra.mxu0 0.0
        %401 = vmatprep.subr.mxu0 0.0
        %402 = vmatpush2.msra.mxu0 0.0
        %403 = vmatprep.subr.mxu0 0.0
        %404 = vmatpush2.msra.mxu0 0.0
        %405 = vmatprep.subr.mxu0 0.0
        %406 = vmatpush2.msra.mxu0 0.0
        %407 = vmatprep.subr.mxu0 0.0
        %408 = vmatpush2.msra.mxu0 0.0
        %409 = vmatprep.mubr.f32.mxu0 0.0
        %410 = vmatmul.mubr.f32.gmra.mxu0 %v330
        %v411 = vpop.f32.mrf.mxu0
        %v412 = vadd.f32 0.0, %v411
        %v413 = vpop.f32.mrf.mxu0
        %v414 = vadd.f32 0.0, %v413
        %415 = vdwg.mxu0
        %416 = vmatprep.subr.mxu0 0.0
        %417 = vmatpush1.msra.mxu0 0.0
        %418 = vmatprep.subr.mxu0 0.0
        %419 = vmatpush1.msra.mxu0 0.0
        %420 = vmatprep.subr.mxu0 0.0
        %421 = vmatpush1.msra.mxu0 0.0
        %422 = vmatprep.subr.mxu0 0.0
        %423 = vmatpush1.msra.mxu0 0.0
        %424 = vmatprep.subr.mxu0 0.0
        %425 = vmatpush1.msra.mxu0 0.0
        %426 = vmatprep.subr.mxu0 0.0
        %427 = vmatpush1.msra.mxu0 0.0
        %428 = vmatprep.subr.mxu0 0.0
        %429 = vmatpush1.msra.mxu0 0.0
        %430 = vmatprep.subr.mxu0 0.0
        %431 = vmatpush1.msra.mxu0 0.0
        %432 = vmatprep.subr.mxu0 0.0
        %433 = vmatpush1.msra.mxu0 0.0
        %434 = vmatprep.subr.mxu0 0.0
        %435 = vmatpush1.msra.mxu0 0.0
        %436 = vmatprep.subr.mxu0 0.0
        %437 = vmatpush1.msra.mxu0 0.0
        %438 = vmatprep.subr.mxu0 %v343
        %439 = vmatpush1.msra.mxu0 %v340
        %440 = vmatprep.subr.mxu0 %v323
        %441 = vmatpush1.msra.mxu0 %v322
        %442 = vmatprep.subr.mxu0 %v319
        %443 = vmatpush1.msra.mxu0 %v318
        %444 = vmatprep.subr.mxu0 %v315
        %445 = vmatpush1.msra.mxu0 %v314
        %446 = vmatprep.subr.mxu0 %v311
        %447 = vmatpush1.msra.mxu0 %v310
        %448 = vmatprep.subr.mxu0 0.0
        %449 = vmatpush2.msra.mxu0 0.0
        %450 = vmatprep.subr.mxu0 0.0
        %451 = vmatpush2.msra.mxu0 0.0
        %452 = vmatprep.subr.mxu0 0.0
        %453 = vmatpush2.msra.mxu0 0.0
        %454 = vmatprep.subr.mxu0 0.0
        %455 = vmatpush2.msra.mxu0 0.0
        %456 = vmatprep.subr.mxu0 0.0
        %457 = vmatpush2.msra.mxu0 0.0
        %458 = vmatprep.subr.mxu0 0.0
        %459 = vmatpush2.msra.mxu0 0.0
        %460 = vmatprep.subr.mxu0 0.0
        %461 = vmatpush2.msra.mxu0 0.0
        %462 = vmatprep.subr.mxu0 0.0
        %463 = vmatpush2.msra.mxu0 0.0
        %464 = vmatprep.subr.mxu0 0.0
        %465 = vmatpush2.msra.mxu0 0.0
        %466 = vmatprep.subr.mxu0 0.0
        %467 = vmatpush2.msra.mxu0 0.0
        %468 = vmatprep.subr.mxu0 0.0
        %469 = vmatpush2.msra.mxu0 0.0
        %470 = vmatprep.subr.mxu0 0.0
        %471 = vmatpush2.msra.mxu0 0.0
        %472 = vmatprep.subr.mxu0 0.0
        %473 = vmatpush2.msra.mxu0 0.0
        %474 = vmatprep.subr.mxu0 0.0
        %475 = vmatpush2.msra.mxu0 0.0
        %476 = vmatprep.subr.mxu0 0.0
        %477 = vmatpush2.msra.mxu0 0.0
        %478 = vmatprep.subr.mxu0 0.0
        %479 = vmatpush2.msra.mxu0 0.0
        %480 = vmatprep.mubr.f32.mxu0 0.0
        %481 = vmatmul.mubr.f32.gmra.mxu0 %v330
        %v482 = vpop.f32.mrf.mxu0
        %v483 = vadd.f32 0.0, %v482
        %v484 = vpop.f32.mrf.mxu0
        %v485 = vadd.f32 0.0, %v484
        %486 = vdwg.mxu0
        %v487 = vmul.f32 %v412, 1.442695
        %v488 = vpow.pop %v487
        %v489 = vmul.f32 %v414, 1.442695
        %v490 = vpow.pop %v489
        %v491 = vmul.f32 %v483, 1.442695
        %v492 = vpow.pop %v491
        %v493 = vmul.f32 %v485, 1.442695
        %v494 = vpow.pop %v493
        %v495 = vld [vmem:[%s255] sm:$0xf]
        %v497 = vlaneseq
        %v498 = vshrl.u32 %v497, 7
        %v499 = vsub.s32 0, %v498
        %v500 = vrot.slane %v495, %v499
        %v501 = vlaneseq
        %v502 = vshrl.u32 %v501, 7
        %v503 = vsub.s32 1, %v502
        %v504 = vrot.slane %v495, %v503
        %v505 = vlaneseq
        %v506 = vshrl.u32 %v505, 7
        %v507 = vsub.s32 2, %v506
        %v508 = vrot.slane %v495, %v507
        %v509 = vlaneseq
        %v510 = vshrl.u32 %v509, 7
        %v511 = vsub.s32 3, %v510
        %v512 = vrot.slane %v495, %v511
        %v517 = vmul.f32 %v488, %v500
        %v518 = vmul.f32 %v490, %v504
        %v519 = vmul.f32 %v492, %v508
        %v520 = vmul.f32 %v494, %v512
        %v521 = vld [vmem:[%s264] sm:$0xf]
        %v523 = vlaneseq
        %v524 = vshrl.u32 %v523, 7
        %v525 = vsub.s32 0, %v524
        %v526 = vrot.slane %v521, %v525
        %v527 = vlaneseq
        %v528 = vshrl.u32 %v527, 7
        %v529 = vsub.s32 1, %v528
        %v530 = vrot.slane %v521, %v529
        %v531 = vlaneseq
        %v532 = vshrl.u32 %v531, 7
        %v533 = vsub.s32 2, %v532
        %v534 = vrot.slane %v521, %v533
        %v535 = vlaneseq
        %v536 = vshrl.u32 %v535, 7
        %v537 = vsub.s32 3, %v536
        %v538 = vrot.slane %v521, %v537
        %v543 = vadd.f32 %v517, %v526
        %v544 = vadd.f32 %v518, %v530
        %v545 = vadd.f32 %v519, %v534
        %v546 = vadd.f32 %v520, %v538
        %v551 = vcombine.low %v543, %v544
        %v552 = vcombine.low %v545, %v546
        %555 = vst [vmem:[%s306] sm:$0x77] %v551
        %556 = vst [vmem:[%s306 + $0x8] sm:$0x77] %v552
        %p557 = scmp.lt.s32.totalorder %s22, 1
        %s558 = scalar_select %p557, %s22, 1
        %s559 = smul.addr %s558, 4
        %s560 = smul.addr %s559, 4
        %s561 = scalar_lea.vmem %s4, %s560
        // Predicated region
        $region53: #{tpu_custom_call.1} parent=35 // pred_check
          %p562 = pneg %p139
        $region54: #{tpu_custom_call.1} parent=35 // pred_check_branch
          %564 = sbr.rel (%p562) target = $region56
        $region55: #{tpu_custom_call.1} parent=35 // pred_region
          _
        $region56: #{tpu_custom_call.1} parent=35 // pred_fallthru
          _
      $region36: #{tpu_custom_call.1} parent=5 // pred_fallthru
        _
      %p565 = scmp.le.s32.totalorder 2, %s17
      // Predicated region
      $region57: #{tpu_custom_call.1} parent=5 // pred_check
        %p566 = pneg %p565
      $region58: #{tpu_custom_call.1} parent=5 // pred_check_branch
        %568 = sbr.rel (%p566) target = $region60
      $region59: #{tpu_custom_call.1} parent=5 // pred_region
        %s569 = ssub.s32 %s17, 2
        // Predicated region
        $region61: #{tpu_custom_call.1} parent=59 // pred_check
          %p570 = pneg %p145
        $region62: #{tpu_custom_call.1} parent=59 // pred_check_branch
          %572 = sbr.rel (%p570) target = $region64
        $region63: #{tpu_custom_call.1} parent=59 // pred_region
          %p573 = scmp.lt.s32.totalorder %s23, 1
          %s574 = scalar_select %p573, %s23, 1
          %s575 = smul.addr %s574, 4
          %s576 = smul.addr %s575, 4
          %s577 = scalar_lea.vmem %s4, %s576
        $region64: #{tpu_custom_call.1} parent=59 // pred_fallthru
          _
      $region60: #{tpu_custom_call.1} parent=5 // pred_fallthru
        _
    $region6: #{tpu_custom_call.1} parent=1 // loop_footer
      %s21 = sadd.s32 1, %s17
    $region7: #{tpu_custom_call.1} parent=1 // loop_footer_branch
      %16 = sbr.rel target = $region3
    $region8: #{tpu_custom_call.1} parent=1 // loop_exit
      _
    %578 = vsyncpa [#allocation3], 1
    %s579 = scalar_lea.sflag [#allocation3], 1
    %580 = vsyncpa %s579, 1
    %581 = vsyncpa [#allocation5], 1
    %s582 = scalar_lea.sflag [#allocation5], 1
    %583 = vsyncpa %s582, 1
    %584 = vsyncpa [#allocation8], 1
    %s585 = scalar_lea.sflag [#allocation8], 1
    %586 = vsyncpa %s585, 1

</llo_original>
